<compile_context>
chip_gen: v7x
topology: tpu7x:2x2x1
jax: 0.10.0
libtpu: 0.0.40
codegen_flags: <defaults>
</compile_context>

<pallas_src>
import functools

import jax
import jax.numpy as jnp
from jax.experimental import pallas as pl
from jax.experimental.pallas import tpu as pltpu

LN_EPS = 1e-5      # PyTorch nn.LayerNorm default
LANE = 128
SUBLANE = 8


def _round_up(x, m):
    return (x + m - 1) // m * m


def _layernorm_onepass(x, gamma, beta, n_true):
    """One-pass LayerNorm over the (possibly lane-padded) last dim.

    Padded columns of `x` are exactly zero (zero-padded W/b upstream), so the
    sums only see the true features; dividing by `n_true` (not the padded
    width) gives the correct PyTorch-LayerNorm statistics. Padded gamma/beta
    are zero, so padded output columns come out exactly zero.
    """
    inv_n = jnp.float32(1.0 / n_true)
    s1 = jnp.sum(x, axis=-1, keepdims=True)
    s2 = jnp.sum(x * x, axis=-1, keepdims=True)
    mean = s1 * inv_n
    var = s2 * inv_n - mean * mean
    xhat = (x - mean) * jax.lax.rsqrt(var + LN_EPS)
    return xhat * gamma + beta


def actor_kernel(s_ref,
                 w1_ref, b1_ref, g1_ref, be1_ref,
                 w2_ref, b2_ref, g2_ref, be2_ref,
                 w3_ref, b3_ref,
                 o_ref, *, f1_true, f2_true):
    bf16 = jnp.bfloat16

    # fc1 (bf16 MXU, f32 accumulate) -> LayerNorm (f32, true width) -> ReLU
    s = s_ref[...]
    if s.dtype != bf16:                     # static at trace time; no-op if producer hands bf16
        s = s.astype(bf16)
    x = jnp.dot(s, w1_ref[...], preferred_element_type=jnp.float32)
    x = x + b1_ref[...]
    x = _layernorm_onepass(x, g1_ref[...], be1_ref[...], f1_true)
    x = jnp.maximum(x, 0.0)

    # fc2 -> LayerNorm -> ReLU
    x = jnp.dot(x.astype(bf16), w2_ref[...], preferred_element_type=jnp.float32)
    x = x + b2_ref[...]
    x = _layernorm_onepass(x, g2_ref[...], be2_ref[...], f2_true)
    x = jnp.maximum(x, 0.0)

    # mu -> tanh   (head is lane-padded; padded cols = tanh(0) = 0, sliced off in wrapper)
    x = jnp.dot(x.astype(bf16), w3_ref[...], preferred_element_type=jnp.float32)
    x = x + b3_ref[...]
    o_ref[...] = jnp.tanh(x).astype(o_ref.dtype)


@functools.partial(jax.jit, static_argnames=("tile_b",))
def actor_forward(state, params, *, tile_b=2048):
    B, d_in = state.shape
    f1 = params["w1"].shape[1]
    f2 = params["w2"].shape[1]
    n_act = params["w3"].shape[1]

    # --- lane-dense padding of all feature dims (exact: pads are zeros, gamma/beta pad = 0) ---
    f1p = _round_up(max(f1, LANE), LANE)
    f2p = _round_up(max(f2, LANE), LANE)
    a_pad = _round_up(max(n_act, LANE), LANE)

    def pad2(a, r, c):
        return jnp.pad(a, ((0, r - a.shape[0]), (0, c - a.shape[1])))

    bf16 = jnp.bfloat16
    w1 = pad2(params["w1"], d_in, f1p).astype(bf16)
    b1 = pad2(params["b1"], 1, f1p)
    g1 = pad2(params["g1"], 1, f1p)          # padded lanes: gamma = 0
    be1 = pad2(params["be1"], 1, f1p)        # padded lanes: beta  = 0
    w2 = pad2(params["w2"], f1p, f2p).astype(bf16)
    b2 = pad2(params["b2"], 1, f2p)
    g2 = pad2(params["g2"], 1, f2p)
    be2 = pad2(params["be2"], 1, f2p)
    w3 = pad2(params["w3"], f2p, a_pad).astype(bf16)
    b3 = pad2(params["b3"], 1, a_pad)

    # --- batch tiling: big tiles to amortize per-step overhead, but >= 2 tiles when the
    #     batch allows it so the "parallel" axis shards across v7x's 2 TensorCores. ---
    b8 = _round_up(B, SUBLANE)
    if b8 >= 2 * SUBLANE:
        tb = min(tile_b, _round_up((b8 + 1) // 2, SUBLANE))
    else:
        tb = b8
    b_pad = _round_up(b8, tb)
    n_tiles = b_pad // tb
    # NOTE: zero-padded batch rows pass through LN with tiny variance; LN_EPS > 0 keeps
    # them finite and they are sliced off below.
    x_in = state if b_pad == B else jnp.pad(state, ((0, b_pad - B), (0, 0)))

    args = (x_in, w1, b1, g1, be1, w2, b2, g2, be2, w3, b3)

    def resident(shape):
        # weights / biases / LN params: same block every grid step -> stay VMEM-resident
        return pl.BlockSpec(shape, lambda i: (0, 0))

    in_specs = [
        pl.BlockSpec((tb, d_in), lambda i: (i, 0)),          # state tile
        resident((d_in, f1p)), resident((1, f1p)), resident((1, f1p)), resident((1, f1p)),
        resident((f1p, f2p)),  resident((1, f2p)), resident((1, f2p)), resident((1, f2p)),
        resident((f2p, a_pad)), resident((1, a_pad)),
    ]
    out_specs = pl.BlockSpec((tb, a_pad), lambda i: (i, 0))

    flops = 2 * b_pad * (d_in * f1p + f1p * f2p + f2p * a_pad)
    transcendentals = b_pad * (2 + a_pad)                    # 2 rsqrt + tanh per row
    bytes_accessed = (
        4 * b_pad * d_in                                     # state (f32)
        + 2 * (d_in * f1p + f1p * f2p + f2p * a_pad)         # bf16 weights
        + 4 * (3 * f1p + 3 * f2p + a_pad)                    # biases / LN params (f32)
        + 4 * b_pad * a_pad                                  # output (f32)
    )

    kernel = functools.partial(actor_kernel, f1_true=f1, f2_true=f2)

    out = pl.pallas_call(
        kernel,
        out_shape=jax.ShapeDtypeStruct((b_pad, a_pad), jnp.float32),
        grid=(n_tiles,),
        in_specs=in_specs,
        out_specs=out_specs,
        compiler_params=pltpu.CompilerParams(
            dimension_semantics=("parallel",)),
        cost_estimate=pl.CostEstimate(
            flops=flops,
            transcendentals=transcendentals,
            bytes_accessed=bytes_accessed),
    )(*args)

    return out[:B, :n_act]


def init_params(key, input_dims, fc1_dims, fc2_dims, n_actions):
    """Deterministic init mirroring the module's intent (fan-in uniform, mu in +-0.003)."""
    ks = jax.random.split(key, 6)
    f1 = 1.0 / jnp.sqrt(jnp.float32(input_dims))
    f2 = 1.0 / jnp.sqrt(jnp.float32(fc1_dims))
    f3 = 0.003
    return {
        # stored as [in, out] so kernel computes x @ W
        "w1": jax.random.uniform(ks[0], (input_dims, fc1_dims), jnp.float32, -f1, f1),
        "b1": jax.random.uniform(ks[1], (1, fc1_dims), jnp.float32, -f1, f1),
        "g1": jnp.ones((1, fc1_dims), jnp.float32),     # LayerNorm weight default
        "be1": jnp.zeros((1, fc1_dims), jnp.float32),   # LayerNorm bias default
        "w2": jax.random.uniform(ks[2], (fc1_dims, fc2_dims), jnp.float32, -f2, f2),
        "b2": jax.random.uniform(ks[3], (1, fc2_dims), jnp.float32, -f2, f2),
        "g2": jnp.ones((1, fc2_dims), jnp.float32),
        "be2": jnp.zeros((1, fc2_dims), jnp.float32),
        "w3": jax.random.uniform(ks[4], (fc2_dims, n_actions), jnp.float32, -f3, f3),
        "b3": jax.random.uniform(ks[5], (1, n_actions), jnp.float32, -f3, f3),
    }


def reference_forward(state, p):
    """Mirrors the kernel's numerics: bf16 matmul operands, f32 accumulate, f32 LN/tanh."""
    bf16 = jnp.bfloat16

    def ln(x, gamma, beta):
        mean = jnp.mean(x, axis=-1, keepdims=True)
        var = jnp.mean((x - mean) * (x - mean), axis=-1, keepdims=True)
        return (x - mean) * jax.lax.rsqrt(var + LN_EPS) * gamma + beta

    x = jnp.dot(state.astype(bf16), p["w1"].astype(bf16),
                preferred_element_type=jnp.float32) + p["b1"]
    x = jnp.maximum(ln(x, p["g1"], p["be1"]), 0.0)
    x = jnp.dot(x.astype(bf16), p["w2"].astype(bf16),
                preferred_element_type=jnp.float32) + p["b2"]
    x = jnp.maximum(ln(x, p["g2"], p["be2"]), 0.0)
    x = jnp.dot(x.astype(bf16), p["w3"].astype(bf16),
                preferred_element_type=jnp.float32) + p["b3"]
    return jnp.tanh(x)


if __name__ == "__main__":
    key = jax.random.PRNGKey(0)
    k_state, k_params = jax.random.split(key)

    batch = 8
    input_dims = 16
    fc1_dims = 64
    fc2_dims = 32
    n_actions = 4

    state = jax.random.normal(k_state, (batch, input_dims), jnp.float32)
    params = init_params(k_params, input_dims, fc1_dims, fc2_dims, n_actions)

    out = actor_forward(state, params)
    out = jax.block_until_ready(out)

    ref = reference_forward(state, params)
    assert out.shape == (batch, n_actions)
    assert jnp.all(jnp.abs(out) <= 1.0 + 1e-6), "tanh bound violated"
    assert jnp.allclose(out, ref, atol=2e-3, rtol=2e-3), "mismatch vs reference"

    print("KERNEL_OK")
</pallas_src>

<mosaic_0001>
module attributes {stable_mosaic.version = 11 : i64} {
  func.func @actor_kernel(%arg0: i32, %arg1: memref<8x16xf32, #tpu.memory_space<vmem>>, %arg2: memref<16x128xbf16, #tpu.memory_space<vmem>>, %arg3: memref<1x128xf32, #tpu.memory_space<vmem>>, %arg4: memref<1x128xf32, #tpu.memory_space<vmem>>, %arg5: memref<1x128xf32, #tpu.memory_space<vmem>>, %arg6: memref<128x128xbf16, #tpu.memory_space<vmem>>, %arg7: memref<1x128xf32, #tpu.memory_space<vmem>>, %arg8: memref<1x128xf32, #tpu.memory_space<vmem>>, %arg9: memref<1x128xf32, #tpu.memory_space<vmem>>, %arg10: memref<128x128xbf16, #tpu.memory_space<vmem>>, %arg11: memref<1x128xf32, #tpu.memory_space<vmem>>, %arg12: memref<8x128xf32, #tpu.memory_space<vmem>>) attributes {dimension_semantics = [#tpu.dimension_semantics<parallel>], iteration_bounds = array<i64: 1>, scalar_prefetch = 0 : i64, scratch_operands = 0 : i64, tpu.core_type = #tpu.core_type<tc>, window_params = [{transform_indices = @transform_0, window_bounds = array<i64: 8, 16>}, {pipeline_mode = #tpu.pipeline_mode<synchronous>, transform_indices = @transform_1, window_bounds = array<i64: 16, 128>}, {pipeline_mode = #tpu.pipeline_mode<synchronous>, transform_indices = @transform_2, window_bounds = array<i64: 1, 128>}, {pipeline_mode = #tpu.pipeline_mode<synchronous>, transform_indices = @transform_3, window_bounds = array<i64: 1, 128>}, {pipeline_mode = #tpu.pipeline_mode<synchronous>, transform_indices = @transform_4, window_bounds = array<i64: 1, 128>}, {pipeline_mode = #tpu.pipeline_mode<synchronous>, transform_indices = @transform_5, window_bounds = array<i64: 128, 128>}, {pipeline_mode = #tpu.pipeline_mode<synchronous>, transform_indices = @transform_6, window_bounds = array<i64: 1, 128>}, {pipeline_mode = #tpu.pipeline_mode<synchronous>, transform_indices = @transform_7, window_bounds = array<i64: 1, 128>}, {pipeline_mode = #tpu.pipeline_mode<synchronous>, transform_indices = @transform_8, window_bounds = array<i64: 1, 128>}, {pipeline_mode = #tpu.pipeline_mode<synchronous>, transform_indices = @transform_9, window_bounds = array<i64: 128, 128>}, {pipeline_mode = #tpu.pipeline_mode<synchronous>, transform_indices = @transform_10, window_bounds = array<i64: 1, 128>}, {transform_indices = @transform_11, window_bounds = array<i64: 8, 128>}]} {
    %c0 = arith.constant 0 : index
    %c0_0 = arith.constant 0 : index
    %0 = vector.load %arg1[%c0, %c0_0] : memref<8x16xf32, #tpu.memory_space<vmem>>, vector<8x16xf32>
    %1 = arith.truncf %0 : vector<8x16xf32> to vector<8x16xbf16>
    %c0_1 = arith.constant 0 : index
    %c0_2 = arith.constant 0 : index
    %2 = vector.load %arg2[%c0_1, %c0_2] : memref<16x128xbf16, #tpu.memory_space<vmem>>, vector<16x128xbf16>
    %cst = arith.constant dense<0.000000e+00> : vector<8x128xf32>
    %3 = tpu.matmul %1, %2, %cst {dimension_numbers = #tpu.dot_dimension_numbers<[1], [0], [0], [1], [0, 0, 1, 1], [], []>} : vector<8x16xbf16>, vector<16x128xbf16>, vector<8x128xf32> -> vector<8x128xf32>
    %c0_3 = arith.constant 0 : index
    %c0_4 = arith.constant 0 : index
    %4 = vector.load %arg3[%c0_3, %c0_4] : memref<1x128xf32, #tpu.memory_space<vmem>>, vector<1x128xf32>
    %5 = vector.broadcast %4 : vector<1x128xf32> to vector<8x128xf32>
    %6 = arith.addf %3, %5 : vector<8x128xf32>
    %c0_5 = arith.constant 0 : index
    %c0_6 = arith.constant 0 : index
    %7 = vector.load %arg4[%c0_5, %c0_6] : memref<1x128xf32, #tpu.memory_space<vmem>>, vector<1x128xf32>
    %c0_7 = arith.constant 0 : index
    %c0_8 = arith.constant 0 : index
    %8 = vector.load %arg5[%c0_7, %c0_8] : memref<1x128xf32, #tpu.memory_space<vmem>>, vector<1x128xf32>
    %cst_9 = arith.constant dense<0.000000e+00> : vector<8xf32>
    %9 = vector.multi_reduction <add>, %6, %cst_9 [1] : vector<8x128xf32> to vector<8xf32>
    %10 = vector.shape_cast %9 : vector<8xf32> to vector<8x1xf32>
    %11 = arith.mulf %6, %6 : vector<8x128xf32>
    %cst_10 = arith.constant dense<0.000000e+00> : vector<8xf32>
    %12 = vector.multi_reduction <add>, %11, %cst_10 [1] : vector<8x128xf32> to vector<8xf32>
    %13 = vector.shape_cast %12 : vector<8xf32> to vector<8x1xf32>
    %cst_11 = arith.constant 1.562500e-02 : f32
    %14 = vector.broadcast %cst_11 : f32 to vector<8x1xf32>
    %15 = arith.mulf %10, %14 : vector<8x1xf32>
    %cst_12 = arith.constant 1.562500e-02 : f32
    %16 = vector.broadcast %cst_12 : f32 to vector<8x1xf32>
    %17 = arith.mulf %13, %16 : vector<8x1xf32>
    %18 = arith.mulf %15, %15 : vector<8x1xf32>
    %19 = arith.subf %17, %18 : vector<8x1xf32>
    %20 = vector.broadcast %15 : vector<8x1xf32> to vector<8x128xf32>
    %21 = arith.subf %6, %20 : vector<8x128xf32>
    %cst_13 = arith.constant 9.99999974E-6 : f32
    %22 = vector.broadcast %cst_13 : f32 to vector<8x1xf32>
    %23 = arith.addf %19, %22 : vector<8x1xf32>
    %24 = math.rsqrt %23 : vector<8x1xf32>
    %25 = vector.broadcast %24 : vector<8x1xf32> to vector<8x128xf32>
    %26 = arith.mulf %21, %25 : vector<8x128xf32>
    %27 = vector.broadcast %7 : vector<1x128xf32> to vector<8x128xf32>
    %28 = arith.mulf %26, %27 : vector<8x128xf32>
    %29 = vector.broadcast %8 : vector<1x128xf32> to vector<8x128xf32>
    %30 = arith.addf %28, %29 : vector<8x128xf32>
    %cst_14 = arith.constant 0.000000e+00 : f32
    %31 = vector.broadcast %cst_14 : f32 to vector<8x128xf32>
    %32 = arith.maximumf %30, %31 : vector<8x128xf32>
    %33 = arith.truncf %32 : vector<8x128xf32> to vector<8x128xbf16>
    %c0_15 = arith.constant 0 : index
    %c0_16 = arith.constant 0 : index
    %34 = vector.load %arg6[%c0_15, %c0_16] : memref<128x128xbf16, #tpu.memory_space<vmem>>, vector<128x128xbf16>
    %cst_17 = arith.constant dense<0.000000e+00> : vector<8x128xf32>
    %35 = tpu.matmul %33, %34, %cst_17 {dimension_numbers = #tpu.dot_dimension_numbers<[1], [0], [0], [1], [0, 0, 1, 1], [], []>} : vector<8x128xbf16>, vector<128x128xbf16>, vector<8x128xf32> -> vector<8x128xf32>
    %c0_18 = arith.constant 0 : index
    %c0_19 = arith.constant 0 : index
    %36 = vector.load %arg7[%c0_18, %c0_19] : memref<1x128xf32, #tpu.memory_space<vmem>>, vector<1x128xf32>
    %37 = vector.broadcast %36 : vector<1x128xf32> to vector<8x128xf32>
    %38 = arith.addf %35, %37 : vector<8x128xf32>
    %c0_20 = arith.constant 0 : index
    %c0_21 = arith.constant 0 : index
    %39 = vector.load %arg8[%c0_20, %c0_21] : memref<1x128xf32, #tpu.memory_space<vmem>>, vector<1x128xf32>
    %c0_22 = arith.constant 0 : index
    %c0_23 = arith.constant 0 : index
    %40 = vector.load %arg9[%c0_22, %c0_23] : memref<1x128xf32, #tpu.memory_space<vmem>>, vector<1x128xf32>
    %cst_24 = arith.constant dense<0.000000e+00> : vector<8xf32>
    %41 = vector.multi_reduction <add>, %38, %cst_24 [1] : vector<8x128xf32> to vector<8xf32>
    %42 = vector.shape_cast %41 : vector<8xf32> to vector<8x1xf32>
    %43 = arith.mulf %38, %38 : vector<8x128xf32>
    %cst_25 = arith.constant dense<0.000000e+00> : vector<8xf32>
    %44 = vector.multi_reduction <add>, %43, %cst_25 [1] : vector<8x128xf32> to vector<8xf32>
    %45 = vector.shape_cast %44 : vector<8xf32> to vector<8x1xf32>
    %cst_26 = arith.constant 3.125000e-02 : f32
    %46 = vector.broadcast %cst_26 : f32 to vector<8x1xf32>
    %47 = arith.mulf %42, %46 : vector<8x1xf32>
    %cst_27 = arith.constant 3.125000e-02 : f32
    %48 = vector.broadcast %cst_27 : f32 to vector<8x1xf32>
    %49 = arith.mulf %45, %48 : vector<8x1xf32>
    %50 = arith.mulf %47, %47 : vector<8x1xf32>
    %51 = arith.subf %49, %50 : vector<8x1xf32>
    %52 = vector.broadcast %47 : vector<8x1xf32> to vector<8x128xf32>
    %53 = arith.subf %38, %52 : vector<8x128xf32>
    %cst_28 = arith.constant 9.99999974E-6 : f32
    %54 = vector.broadcast %cst_28 : f32 to vector<8x1xf32>
    %55 = arith.addf %51, %54 : vector<8x1xf32>
    %56 = math.rsqrt %55 : vector<8x1xf32>
    %57 = vector.broadcast %56 : vector<8x1xf32> to vector<8x128xf32>
    %58 = arith.mulf %53, %57 : vector<8x128xf32>
    %59 = vector.broadcast %39 : vector<1x128xf32> to vector<8x128xf32>
    %60 = arith.mulf %58, %59 : vector<8x128xf32>
    %61 = vector.broadcast %40 : vector<1x128xf32> to vector<8x128xf32>
    %62 = arith.addf %60, %61 : vector<8x128xf32>
    %cst_29 = arith.constant 0.000000e+00 : f32
    %63 = vector.broadcast %cst_29 : f32 to vector<8x128xf32>
    %64 = arith.maximumf %62, %63 : vector<8x128xf32>
    %65 = arith.truncf %64 : vector<8x128xf32> to vector<8x128xbf16>
    %c0_30 = arith.constant 0 : index
    %c0_31 = arith.constant 0 : index
    %66 = vector.load %arg10[%c0_30, %c0_31] : memref<128x128xbf16, #tpu.memory_space<vmem>>, vector<128x128xbf16>
    %cst_32 = arith.constant dense<0.000000e+00> : vector<8x128xf32>
    %67 = tpu.matmul %65, %66, %cst_32 {dimension_numbers = #tpu.dot_dimension_numbers<[1], [0], [0], [1], [0, 0, 1, 1], [], []>} : vector<8x128xbf16>, vector<128x128xbf16>, vector<8x128xf32> -> vector<8x128xf32>
    %c0_33 = arith.constant 0 : index
    %c0_34 = arith.constant 0 : index
    %68 = vector.load %arg11[%c0_33, %c0_34] : memref<1x128xf32, #tpu.memory_space<vmem>>, vector<1x128xf32>
    %69 = vector.broadcast %68 : vector<1x128xf32> to vector<8x128xf32>
    %70 = arith.addf %67, %69 : vector<8x128xf32>
    %71 = math.tanh %70 : vector<8x128xf32>
    %c0_35 = arith.constant 0 : index
    %c0_36 = arith.constant 0 : index
    %72 = vector.load %arg12[%c0_35, %c0_36] : memref<8x128xf32, #tpu.memory_space<vmem>>, vector<8x128xf32>
    tpu.vector_store %arg12[%c0_35, %c0_36], %71 {strides = array<i32>} : memref<8x128xf32, #tpu.memory_space<vmem>>, vector<8x128xf32>,
    return
  }
  func.func @transform_0(%arg0: i32) -> (i32, i32) {
    %c0_i32 = arith.constant 0 : i32
    %c0_i32_0 = arith.constant 0 : i32
    return %arg0, %c0_i32 : i32, i32
  }
  func.func @transform_1(%arg0: i32) -> (i32, i32) {
    %c0_i32 = arith.constant 0 : i32
    %c0_i32_0 = arith.constant 0 : i32
    %c0_i32_1 = arith.constant 0 : i32
    return %c0_i32, %c0_i32_0 : i32, i32
  }
  func.func @transform_2(%arg0: i32) -> (i32, i32) {
    %c0_i32 = arith.constant 0 : i32
    %c0_i32_0 = arith.constant 0 : i32
    %c0_i32_1 = arith.constant 0 : i32
    return %c0_i32, %c0_i32_0 : i32, i32
  }
  func.func @transform_3(%arg0: i32) -> (i32, i32) {
    %c0_i32 = arith.constant 0 : i32
    %c0_i32_0 = arith.constant 0 : i32
    %c0_i32_1 = arith.constant 0 : i32
    return %c0_i32, %c0_i32_0 : i32, i32
  }
  func.func @transform_4(%arg0: i32) -> (i32, i32) {
    %c0_i32 = arith.constant 0 : i32
    %c0_i32_0 = arith.constant 0 : i32
    %c0_i32_1 = arith.constant 0 : i32
    return %c0_i32, %c0_i32_0 : i32, i32
  }
  func.func @transform_5(%arg0: i32) -> (i32, i32) {
    %c0_i32 = arith.constant 0 : i32
    %c0_i32_0 = arith.constant 0 : i32
    %c0_i32_1 = arith.constant 0 : i32
    return %c0_i32, %c0_i32_0 : i32, i32
  }
  func.func @transform_6(%arg0: i32) -> (i32, i32) {
    %c0_i32 = arith.constant 0 : i32
    %c0_i32_0 = arith.constant 0 : i32
    %c0_i32_1 = arith.constant 0 : i32
    return %c0_i32, %c0_i32_0 : i32, i32
  }
  func.func @transform_7(%arg0: i32) -> (i32, i32) {
    %c0_i32 = arith.constant 0 : i32
    %c0_i32_0 = arith.constant 0 : i32
    %c0_i32_1 = arith.constant 0 : i32
    return %c0_i32, %c0_i32_0 : i32, i32
  }
  func.func @transform_8(%arg0: i32) -> (i32, i32) {
    %c0_i32 = arith.constant 0 : i32
    %c0_i32_0 = arith.constant 0 : i32
    %c0_i32_1 = arith.constant 0 : i32
    return %c0_i32, %c0_i32_0 : i32, i32
  }
  func.func @transform_9(%arg0: i32) -> (i32, i32) {
    %c0_i32 = arith.constant 0 : i32
    %c0_i32_0 = arith.constant 0 : i32
    %c0_i32_1 = arith.constant 0 : i32
    return %c0_i32, %c0_i32_0 : i32, i32
  }
  func.func @transform_10(%arg0: i32) -> (i32, i32) {
    %c0_i32 = arith.constant 0 : i32
    %c0_i32_0 = arith.constant 0 : i32
    %c0_i32_1 = arith.constant 0 : i32
    return %c0_i32, %c0_i32_0 : i32, i32
  }
  func.func @transform_11(%arg0: i32) -> (i32, i32) {
    %c0_i32 = arith.constant 0 : i32
    %c0_i32_0 = arith.constant 0 : i32
    return %arg0, %c0_i32 : i32, i32
  }
}

</mosaic_0001>

<llo_original>
// kernel: actor_forward.1
$region0: #{actor_forward.1}
  #allocation0 [shape = 'u32[]', space=smem, size = 0x4, offset = 0x4, fixed_abs, tag = 'smem constant byte address 0x4 - core index']
  #allocation1 [shape = 'u32[144,128]{1,0:T(1,128)}', space=vmem, size = 0x12000, scoped, tag = 'internal scratch']
  %s0 = inlined_call_operand.vmem [shape: f32[8,16], index: 0, kind: input, shape index: {}]
  %s1 = inlined_call_operand.vmem [shape: bf16[16,128], index: 1, kind: input, shape index: {}]
  %s2 = inlined_call_operand.vmem [shape: f32[1,128], index: 2, kind: input, shape index: {}]
  %s3 = inlined_call_operand.vmem [shape: f32[1,128], index: 3, kind: input, shape index: {}]
  %s4 = inlined_call_operand.vmem [shape: f32[1,128], index: 4, kind: input, shape index: {}]
  %s5 = inlined_call_operand.vmem [shape: bf16[128,128], index: 5, kind: input, shape index: {}]
  %s6 = inlined_call_operand.vmem [shape: f32[1,128], index: 6, kind: input, shape index: {}]
  %s7 = inlined_call_operand.vmem [shape: f32[1,128], index: 7, kind: input, shape index: {}]
  %s8 = inlined_call_operand.vmem [shape: f32[1,128], index: 8, kind: input, shape index: {}]
  %s9 = inlined_call_operand.vmem [shape: bf16[128,128], index: 9, kind: input, shape index: {}]
  %s10 = inlined_call_operand.vmem [shape: f32[1,128], index: 10, kind: input, shape index: {}]
  %s11 = inlined_call_operand.vmem [shape: f32[8,128], index: 11, kind: output, shape index: {}]
  %s12 = sld [smem:[#allocation0]]
  $region54: #{actor_forward.1} parent=0
    _
  %s14 = ssub.s32 1, %s12
  %s15 = scalar_select 0, %s14, %s12
  // Predicated region
  $region2: #{actor_forward.1} parent=0 // pred_check
    _
  $region3: #{actor_forward.1} parent=0 // pred_check_branch
    %17 = sbr.rel (0) target = $region5
  $region4: #{actor_forward.1} parent=0 // pred_region
    _
  $region5: #{actor_forward.1} parent=0 // pred_fallthru
    _
  // Predicated region
  $region6: #{actor_forward.1} parent=0 // pred_check
    _
  $region7: #{actor_forward.1} parent=0 // pred_check_branch
    %19 = sbr.rel (0) target = $region9
  $region8: #{actor_forward.1} parent=0 // pred_region
    _
  $region9: #{actor_forward.1} parent=0 // pred_fallthru
    _
  // Predicated region
  $region10: #{actor_forward.1} parent=0 // pred_check
    _
  $region11: #{actor_forward.1} parent=0 // pred_check_branch
    %21 = sbr.rel (0) target = $region13
  $region12: #{actor_forward.1} parent=0 // pred_region
    _
  $region13: #{actor_forward.1} parent=0 // pred_fallthru
    _
  // Predicated region
  $region14: #{actor_forward.1} parent=0 // pred_check
    _
  $region15: #{actor_forward.1} parent=0 // pred_check_branch
    %23 = sbr.rel (0) target = $region17
  $region16: #{actor_forward.1} parent=0 // pred_region
    _
  $region17: #{actor_forward.1} parent=0 // pred_fallthru
    _
  // Predicated region
  $region18: #{actor_forward.1} parent=0 // pred_check
    _
  $region19: #{actor_forward.1} parent=0 // pred_check_branch
    %25 = sbr.rel (0) target = $region21
  $region20: #{actor_forward.1} parent=0 // pred_region
    _
  $region21: #{actor_forward.1} parent=0 // pred_fallthru
    _
  // Predicated region
  $region22: #{actor_forward.1} parent=0 // pred_check
    _
  $region23: #{actor_forward.1} parent=0 // pred_check_branch
    %27 = sbr.rel (0) target = $region25
  $region24: #{actor_forward.1} parent=0 // pred_region
    _
  $region25: #{actor_forward.1} parent=0 // pred_fallthru
    _
  // Predicated region
  $region26: #{actor_forward.1} parent=0 // pred_check
    _
  $region27: #{actor_forward.1} parent=0 // pred_check_branch
    %29 = sbr.rel (0) target = $region29
  $region28: #{actor_forward.1} parent=0 // pred_region
    _
  $region29: #{actor_forward.1} parent=0 // pred_fallthru
    _
  // Predicated region
  $region30: #{actor_forward.1} parent=0 // pred_check
    _
  $region31: #{actor_forward.1} parent=0 // pred_check_branch
    %31 = sbr.rel (0) target = $region33
  $region32: #{actor_forward.1} parent=0 // pred_region
    _
  $region33: #{actor_forward.1} parent=0 // pred_fallthru
    _
  // Predicated region
  $region34: #{actor_forward.1} parent=0 // pred_check
    _
  $region35: #{actor_forward.1} parent=0 // pred_check_branch
    %33 = sbr.rel (0) target = $region37
  $region36: #{actor_forward.1} parent=0 // pred_region
    _
  $region37: #{actor_forward.1} parent=0 // pred_fallthru
    _
  // Predicated region
  $region38: #{actor_forward.1} parent=0 // pred_check
    _
  $region39: #{actor_forward.1} parent=0 // pred_check_branch
    %35 = sbr.rel (0) target = $region41
  $region40: #{actor_forward.1} parent=0 // pred_region
    _
  $region41: #{actor_forward.1} parent=0 // pred_fallthru
    _
  // Predicated region
  $region42: #{actor_forward.1} parent=0 // pred_check
    _
  $region43: #{actor_forward.1} parent=0 // pred_check_branch
    %37 = sbr.rel (0) target = $region45
  $region44: #{actor_forward.1} parent=0 // pred_region
    _
  $region45: #{actor_forward.1} parent=0 // pred_fallthru
    _
  %v39 = vld [vmem:[%s0] sm:$0xff]
  %v40 = vpack.c.bf16 %v39, %v39
  %v41 = vld [vmem:[%s1] sm:$0xf]
  %v42 = vld [vmem:[%s1 + $0x4] sm:$0xf]
  %v43 = vld [vmem:[%s2] sm:$0x1]
  %v45 = vlaneseq
  %v46 = vshrl.u32 %v45, 7
  %v47 = vsub.s32 0, %v46
  %v48 = vrot.slane %v43, %v47
  %v52 = vunpack.c.l.b16 %v41
  %v53 = vunpack.c.l.b16 %v42
  %v54 = vpack.c.b16 %v53, %v52
  %vm56 = vcmask 130048
  %v58 = vsel %vm56, %v40, 0
  %60 = vmatprep.subr.bf16.mxu0 0
  %61 = vmatpush1.bf16.msra.mxu0 %v54
  %62 = vmatprep.subr.bf16.mxu0 0
  %63 = vmatpush1.bf16.msra.mxu0 0
  %64 = vmatprep.subr.bf16.mxu0 0
  %65 = vmatpush1.bf16.msra.mxu0 0
  %66 = vmatprep.subr.bf16.mxu0 0
  %67 = vmatpush1.bf16.msra.mxu0 0
  %68 = vmatprep.subr.bf16.mxu0 0
  %69 = vmatpush1.bf16.msra.mxu0 0
  %70 = vmatprep.subr.bf16.mxu0 0
  %71 = vmatpush1.bf16.msra.mxu0 0
  %72 = vmatprep.subr.bf16.mxu0 0
  %73 = vmatpush1.bf16.msra.mxu0 0
  %74 = vmatprep.subr.bf16.mxu0 0
  %75 = vmatpush1.bf16.msra.mxu0 0
  %76 = vmatprep.subr.bf16.mxu0 0
  %77 = vmatpush1.bf16.msra.mxu0 0
  %78 = vmatprep.subr.bf16.mxu0 0
  %79 = vmatpush1.bf16.msra.mxu0 0
  %80 = vmatprep.subr.bf16.mxu0 0
  %81 = vmatpush1.bf16.msra.mxu0 0
  %82 = vmatprep.subr.bf16.mxu0 0
  %83 = vmatpush1.bf16.msra.mxu0 0
  %84 = vmatprep.subr.bf16.mxu0 0
  %85 = vmatpush1.bf16.msra.mxu0 0
  %86 = vmatprep.subr.bf16.mxu0 0
  %87 = vmatpush1.bf16.msra.mxu0 0
  %88 = vmatprep.subr.bf16.mxu0 0
  %89 = vmatpush1.bf16.msra.mxu0 0
  %90 = vmatprep.subr.bf16.mxu0 0
  %91 = vmatpush1.bf16.msra.mxu0 0
  %92 = vmatprep.mubr.bf16.mxu0 0
  %93 = vmatmul.mubr.bf16.gmra.mrb[0].mxu0 %v58
  %v94 = vpop.f32.mrb[0].mxu0
  %v95 = vadd.f32 %v48, %v94
  %v96 = vpop.f32.mrb[0].mxu0
  %v97 = vpop.f32.mrb[0].mxu0
  %v98 = vpop.f32.mrb[0].mxu0
  %99 = vdwg.mxu0
  %v100 = vld [vmem:[%s3] sm:$0x1]
  %v101 = vld [vmem:[%s4] sm:$0x1]
  %102 = vadd.xlane.f32.xlu0 %v95
  %v103 = vpop.xlane.xlu0 %102
  %v104 = vmul.f32 %v95, %v95
  %105 = vadd.xlane.f32.xlu0 %v104
  %v106 = vpop.xlane.xlu0 %105
  %v107 = vmul.f32 %v103, 0.015625
  %v108 = vmul.f32 %v106, 0.015625
  %v109 = vmul.f32 %v107, %v107
  %v110 = vsub.f32 %v108, %v109
  %v111 = vsub.f32 %v95, %v107
  %v112 = vadd.f32 %v110, 1e-05
  %v113 = vrsqrt.pop %v112
  %v114 = vmul.f32 %v111, %v113
  %v116 = vlaneseq
  %v117 = vshrl.u32 %v116, 7
  %v118 = vsub.s32 0, %v117
  %v119 = vrot.slane %v100, %v118
  %v121 = vmul.f32 %v114, %v119
  %v123 = vlaneseq
  %v124 = vshrl.u32 %v123, 7
  %v125 = vsub.s32 0, %v124
  %v126 = vrot.slane %v101, %v125
  %v128 = vadd.f32 %v121, %v126
  %v129 = vmax.f32 %v128, 0.0
  %v130 = vpack.c.bf16 %v129, %v129
  %v131 = vld [vmem:[%s5] sm:$0xf]
  %v132 = vld [vmem:[%s5 + $0x4] sm:$0xf]
  %v133 = vld [vmem:[%s5 + $0x8] sm:$0xf]
  %v134 = vld [vmem:[%s5 + $0xc] sm:$0xf]
  %v135 = vld [vmem:[%s5 + $0x10] sm:$0xf]
  %v136 = vld [vmem:[%s5 + $0x14] sm:$0xf]
  %v137 = vld [vmem:[%s5 + $0x18] sm:$0xf]
  %v138 = vld [vmem:[%s5 + $0x1c] sm:$0xf]
  %v139 = vld [vmem:[%s5 + $0x20] sm:$0xf]
  %v140 = vld [vmem:[%s5 + $0x24] sm:$0xf]
  %v141 = vld [vmem:[%s5 + $0x28] sm:$0xf]
  %v142 = vld [vmem:[%s5 + $0x2c] sm:$0xf]
  %v143 = vld [vmem:[%s5 + $0x30] sm:$0xf]
  %v144 = vld [vmem:[%s5 + $0x34] sm:$0xf]
  %v145 = vld [vmem:[%s5 + $0x38] sm:$0xf]
  %v146 = vld [vmem:[%s5 + $0x3c] sm:$0xf]
  %v147 = vld [vmem:[%s6] sm:$0x1]
  %v149 = vlaneseq
  %v150 = vshrl.u32 %v149, 7
  %v151 = vsub.s32 0, %v150
  %v152 = vrot.slane %v147, %v151
  %v170 = vunpack.c.l.b16 %v131
  %v171 = vunpack.c.l.b16 %v132
  %v172 = vunpack.c.l.b16 %v133
  %v173 = vunpack.c.l.b16 %v134
  %v174 = vunpack.c.l.b16 %v135
  %v175 = vunpack.c.l.b16 %v136
  %v176 = vunpack.c.l.b16 %v137
  %v177 = vunpack.c.l.b16 %v138
  %v178 = vunpack.c.l.b16 %v139
  %v179 = vunpack.c.l.b16 %v140
  %v180 = vunpack.c.l.b16 %v141
  %v181 = vunpack.c.l.b16 %v142
  %v182 = vunpack.c.l.b16 %v143
  %v183 = vunpack.c.l.b16 %v144
  %v184 = vunpack.c.l.b16 %v145
  %v185 = vunpack.c.l.b16 %v146
  %v186 = vpack.c.b16 %v171, %v170
  %v187 = vpack.c.b16 %v173, %v172
  %v188 = vpack.c.b16 %v175, %v174
  %v189 = vpack.c.b16 %v177, %v176
  %v190 = vpack.c.b16 %v179, %v178
  %v191 = vpack.c.b16 %v181, %v180
  %v192 = vpack.c.b16 %v183, %v182
  %v193 = vpack.c.b16 %v185, %v184
  %202 = vmatprep.subr.bf16.mxu0 0
  %203 = vmatpush1.bf16.msra.mxu0 %v186
  %204 = vmatprep.subr.bf16.mxu0 0
  %205 = vmatpush1.bf16.msra.mxu0 %v187
  %206 = vmatprep.subr.bf16.mxu0 0
  %207 = vmatpush1.bf16.msra.mxu0 %v188
  %208 = vmatprep.subr.bf16.mxu0 0
  %209 = vmatpush1.bf16.msra.mxu0 %v189
  %210 = vmatprep.subr.bf16.mxu0 0
  %211 = vmatpush1.bf16.msra.mxu0 %v190
  %212 = vmatprep.subr.bf16.mxu0 0
  %213 = vmatpush1.bf16.msra.mxu0 %v191
  %214 = vmatprep.subr.bf16.mxu0 0
  %215 = vmatpush1.bf16.msra.mxu0 %v192
  %216 = vmatprep.subr.bf16.mxu0 0
  %217 = vmatpush1.bf16.msra.mxu0 %v193
  %218 = vmatprep.subr.bf16.mxu0 0
  %219 = vmatpush1.bf16.msra.mxu0 0
  %220 = vmatprep.subr.bf16.mxu0 0
  %221 = vmatpush1.bf16.msra.mxu0 0
  %222 = vmatprep.subr.bf16.mxu0 0
  %223 = vmatpush1.bf16.msra.mxu0 0
  %224 = vmatprep.subr.bf16.mxu0 0
  %225 = vmatpush1.bf16.msra.mxu0 0
  %226 = vmatprep.subr.bf16.mxu0 0
  %227 = vmatpush1.bf16.msra.mxu0 0
  %228 = vmatprep.subr.bf16.mxu0 0
  %229 = vmatpush1.bf16.msra.mxu0 0
  %230 = vmatprep.subr.bf16.mxu0 0
  %231 = vmatpush1.bf16.msra.mxu0 0
  %232 = vmatprep.subr.bf16.mxu0 0
  %233 = vmatpush1.bf16.msra.mxu0 0
  %234 = vmatprep.mubr.bf16.mxu0 0
  %235 = vmatmul.mubr.bf16.gmra.mrb[0].mxu0 %v130
  %v236 = vpop.f32.mrb[0].mxu0
  %v237 = vadd.f32 %v152, %v236
  %v238 = vpop.f32.mrb[0].mxu0
  %v239 = vpop.f32.mrb[0].mxu0
  %v240 = vpop.f32.mrb[0].mxu0
  %241 = vdwg.mxu0
  %v242 = vld [vmem:[%s7] sm:$0x1]
  %v243 = vld [vmem:[%s8] sm:$0x1]
  %244 = vadd.xlane.f32.xlu0 %v237
  %v245 = vpop.xlane.xlu0 %244
  %v246 = vmul.f32 %v237, %v237
  %247 = vadd.xlane.f32.xlu0 %v246
  %v248 = vpop.xlane.xlu0 %247
  %v249 = vmul.f32 %v245, 0.03125
  %v250 = vmul.f32 %v248, 0.03125
  %v251 = vmul.f32 %v249, %v249
  %v252 = vsub.f32 %v250, %v251
  %v253 = vsub.f32 %v237, %v249
  %v254 = vadd.f32 %v252, 1e-05
  %v255 = vrsqrt.pop %v254
  %v256 = vmul.f32 %v253, %v255
  %v258 = vlaneseq
  %v259 = vshrl.u32 %v258, 7
  %v260 = vsub.s32 0, %v259
  %v261 = vrot.slane %v242, %v260
  %v263 = vmul.f32 %v256, %v261
  %v265 = vlaneseq
  %v266 = vshrl.u32 %v265, 7
  %v267 = vsub.s32 0, %v266
  %v268 = vrot.slane %v243, %v267
  %v270 = vadd.f32 %v263, %v268
  %v271 = vmax.f32 %v270, 0.0
  %v272 = vpack.c.bf16 %v271, %v271
  %v273 = vld [vmem:[%s9] sm:$0xf]
  %v274 = vld [vmem:[%s9 + $0x4] sm:$0xf]
  %v275 = vld [vmem:[%s9 + $0x8] sm:$0xf]
  %v276 = vld [vmem:[%s9 + $0xc] sm:$0xf]
  %v277 = vld [vmem:[%s9 + $0x10] sm:$0xf]
  %v278 = vld [vmem:[%s9 + $0x14] sm:$0xf]
  %v279 = vld [vmem:[%s9 + $0x18] sm:$0xf]
  %v280 = vld [vmem:[%s9 + $0x1c] sm:$0xf]
  %v281 = vld [vmem:[%s9 + $0x20] sm:$0xf]
  %v282 = vld [vmem:[%s9 + $0x24] sm:$0xf]
  %v283 = vld [vmem:[%s9 + $0x28] sm:$0xf]
  %v284 = vld [vmem:[%s9 + $0x2c] sm:$0xf]
  %v285 = vld [vmem:[%s9 + $0x30] sm:$0xf]
  %v286 = vld [vmem:[%s9 + $0x34] sm:$0xf]
  %v287 = vld [vmem:[%s9 + $0x38] sm:$0xf]
  %v288 = vld [vmem:[%s9 + $0x3c] sm:$0xf]
  %v289 = vld [vmem:[%s10] sm:$0x1]
  %v291 = vlaneseq
  %v292 = vshrl.u32 %v291, 7
  %v293 = vsub.s32 0, %v292
  %v294 = vrot.slane %v289, %v293
  %v312 = vunpack.c.l.b16 %v273
  %v313 = vunpack.c.l.b16 %v274
  %v314 = vunpack.c.l.b16 %v275
  %v315 = vunpack.c.l.b16 %v276
  %v316 = vunpack.c.l.b16 %v277
  %v317 = vunpack.c.l.b16 %v278
  %v318 = vunpack.c.l.b16 %v279
  %v319 = vunpack.c.l.b16 %v280
  %v320 = vunpack.c.l.b16 %v281
  %v321 = vunpack.c.l.b16 %v282
  %v322 = vunpack.c.l.b16 %v283
  %v323 = vunpack.c.l.b16 %v284
  %v324 = vunpack.c.l.b16 %v285
  %v325 = vunpack.c.l.b16 %v286
  %v326 = vunpack.c.l.b16 %v287
  %v327 = vunpack.c.l.b16 %v288
  %v328 = vpack.c.b16 %v313, %v312
  %v329 = vpack.c.b16 %v315, %v314
  %v330 = vpack.c.b16 %v317, %v316
  %v331 = vpack.c.b16 %v319, %v318
  %v332 = vpack.c.b16 %v321, %v320
  %v333 = vpack.c.b16 %v323, %v322
  %v334 = vpack.c.b16 %v325, %v324
  %v335 = vpack.c.b16 %v327, %v326
  %344 = vmatprep.subr.bf16.mxu0 0
  %345 = vmatpush1.bf16.msra.mxu0 %v328
  %346 = vmatprep.subr.bf16.mxu0 0
  %347 = vmatpush1.bf16.msra.mxu0 %v329
  %348 = vmatprep.subr.bf16.mxu0 0
  %349 = vmatpush1.bf16.msra.mxu0 %v330
  %350 = vmatprep.subr.bf16.mxu0 0
  %351 = vmatpush1.bf16.msra.mxu0 %v331
  %352 = vmatprep.subr.bf16.mxu0 0
  %353 = vmatpush1.bf16.msra.mxu0 %v332
  %354 = vmatprep.subr.bf16.mxu0 0
  %355 = vmatpush1.bf16.msra.mxu0 %v333
  %356 = vmatprep.subr.bf16.mxu0 0
  %357 = vmatpush1.bf16.msra.mxu0 %v334
  %358 = vmatprep.subr.bf16.mxu0 0
  %359 = vmatpush1.bf16.msra.mxu0 %v335
  %360 = vmatprep.subr.bf16.mxu0 0
  %361 = vmatpush1.bf16.msra.mxu0 0
  %362 = vmatprep.subr.bf16.mxu0 0
  %363 = vmatpush1.bf16.msra.mxu0 0
  %364 = vmatprep.subr.bf16.mxu0 0
  %365 = vmatpush1.bf16.msra.mxu0 0
  %366 = vmatprep.subr.bf16.mxu0 0
  %367 = vmatpush1.bf16.msra.mxu0 0
  %368 = vmatprep.subr.bf16.mxu0 0
  %369 = vmatpush1.bf16.msra.mxu0 0
  %370 = vmatprep.subr.bf16.mxu0 0
  %371 = vmatpush1.bf16.msra.mxu0 0
  %372 = vmatprep.subr.bf16.mxu0 0
  %373 = vmatpush1.bf16.msra.mxu0 0
  %374 = vmatprep.subr.bf16.mxu0 0
  %375 = vmatpush1.bf16.msra.mxu0 0
  %376 = vmatprep.mubr.bf16.mxu0 0
  %377 = vmatmul.mubr.bf16.gmra.mrb[0].mxu0 %v272
  %v378 = vpop.f32.mrb[0].mxu0
  %v379 = vadd.f32 %v294, %v378
  %v380 = vpop.f32.mrb[0].mxu0
  %v381 = vpop.f32.mrb[0].mxu0
  %v382 = vpop.f32.mrb[0].mxu0
  %383 = vdwg.mxu0
  %v384 = vtanh.pop %v379
  %385 = vst [vmem:[%s11] sm:$0xff] %v384
  // Predicated region
  $region46: #{actor_forward.1} parent=0 // pred_check
    _
  $region47: #{actor_forward.1} parent=0 // pred_check_branch
    %387 = sbr.rel (0) target = $region49
  $region48: #{actor_forward.1} parent=0 // pred_region
    _
  $region49: #{actor_forward.1} parent=0 // pred_fallthru
    _
  // Predicated region
  $region50: #{actor_forward.1} parent=0 // pred_check
    _
  $region51: #{actor_forward.1} parent=0 // pred_check_branch
    %389 = sbr.rel (0) target = $region53
  $region52: #{actor_forward.1} parent=0 // pred_region
    _
  $region53: #{actor_forward.1} parent=0 // pred_fallthru
    _

</llo_original>
